<compile_context>
chip_gen: v5e
topology: v5e:2x2
jax: 0.10.0
libtpu: 0.0.40
codegen_flags: <defaults>
</compile_context>

<pallas_src>
import functools
import math

import jax
import jax.numpy as jnp
from jax.experimental import pallas as pl
from jax.experimental.pallas import tpu as pltpu

MIB = 1024 * 1024


def _round_up(x, m):
    return (x + m - 1) // m * m


def _vmem_capacity_bytes():
    try:
        return int(pltpu.get_tpu_info().vmem_capacity_bytes)
    except Exception:
        return 64 * MIB  # conservative (v7x); v5e/v6e have 128 MiB


def _vmem_estimate_bytes(tm, tn, in_size, hp, mm_bytes, io_bytes):
    """Double-buffered I/O blocks + in-kernel f32 temporaries."""
    per_step = (tm * in_size * mm_bytes        # x matmul operand
                + tm * hp * mm_bytes           # hx matmul operand (full K)
                + tm * tn * io_bytes           # hx output-tile columns
                + in_size * 3 * tn * mm_bytes  # fused x2h weight slab
                + hp * 3 * tn * mm_bytes       # fused h2h weight slab
                + 4 * tn * 4                   # folded biases
                + tm * tn * io_bytes)          # output tile
    temporaries = (2 * 3 + 4) * tm * tn * 4    # xg/hg results + gate temps (f32)
    return 2 * per_step + temporaries


def choose_tiling(batch, input_size, hidden_size, *,
                  matmul_dtype=jnp.bfloat16, io_dtype=jnp.float32):
    """Generation-portable tile selection + VMEM budgeting."""
    hp = _round_up(hidden_size, 128)
    # One fat batch tile whenever possible: fills the MXU rows and means each
    # weight slab is streamed exactly once (weights dominate HBM traffic).
    tm = min(256, _round_up(batch, 8))
    bp = _round_up(batch, tm)

    mm_bytes = jnp.dtype(matmul_dtype).itemsize
    io_bytes = jnp.dtype(io_dtype).itemsize
    capacity = _vmem_capacity_bytes()
    budget = (capacity * 7) // 10          # headroom for compiler scratch/spill

    tn = 128
    for cand in (512, 256, 128):
        if hp % cand == 0 and _vmem_estimate_bytes(
                tm, cand, input_size, hp, mm_bytes, io_bytes) <= budget:
            tn = cand
            break

    need = _vmem_estimate_bytes(tm, tn, input_size, hp, mm_bytes, io_bytes)
    vmem_limit = int(min((capacity * 9) // 10, max(need * 5 // 4, 32 * MIB)))
    return dict(tm=tm, tn=tn, Bp=bp, Hp=hp, vmem_limit=vmem_limit)


def _fuse_gate_columns(w_r, w_u, w_n, tn):
    """[K, Hp] per gate -> [K, 3*Hp] with [r|u|n] contiguous per tn-wide tile."""
    k, hp = w_r.shape
    nb = hp // tn
    stacked = jnp.stack([w_r.reshape(k, nb, tn),
                         w_u.reshape(k, nb, tn),
                         w_n.reshape(k, nb, tn)], axis=2)   # (K, nb, 3, tn)
    return stacked.reshape(k, nb * 3 * tn)


def prepare_gru_params(wx, wh, bx, bh, *, tn, matmul_dtype=jnp.bfloat16):
    """One-time host-side weight/bias re-layout (hoisted out of the hot loop).

    Returns (wxg [In, 3*Hp], whg [Hp, 3*Hp], b4 [4, Hp]) where each tn-wide
    output tile's [r|u|n] weight columns are contiguous and the r/u biases are
    pre-folded (bx+bh).
    """
    in_size, h3 = wx.shape
    h = h3 // 3
    hp = _round_up(h, 128)
    assert hp % tn == 0
    pad_h = hp - h

    bx = jnp.reshape(bx, (3 * h,))
    bh = jnp.reshape(bh, (3 * h,))
    wx_r, wx_u, wx_n = jnp.split(wx, 3, axis=1)     # (In, H) each
    wh_r, wh_u, wh_n = jnp.split(wh, 3, axis=1)     # (H,  H) each
    bx_r, bx_u, bx_n = jnp.split(bx, 3)
    bh_r, bh_u, bh_n = jnp.split(bh, 3)

    pad_c = lambda a: jnp.pad(a, ((0, 0), (0, pad_h)))
    pad_rc = lambda a: jnp.pad(a, ((0, pad_h), (0, pad_h)))
    pad_v = lambda v: jnp.pad(v, (0, pad_h))

    wxg = _fuse_gate_columns(pad_c(wx_r), pad_c(wx_u), pad_c(wx_n), tn)
    whg = _fuse_gate_columns(pad_rc(wh_r), pad_rc(wh_u), pad_rc(wh_n), tn)
    b4 = jnp.stack([pad_v(bx_r + bh_r),             # folded reset-gate bias
                    pad_v(bx_u + bh_u),             # folded update-gate bias
                    pad_v(bx_n),
                    pad_v(bh_n)])                   # (4, Hp)
    return (wxg.astype(matmul_dtype), whg.astype(matmul_dtype),
            b4.astype(jnp.float32))


def _gru_cell_kernel(x_ref, hk_ref, ht_ref, wx_ref, wh_ref, b_ref, out_ref,
                     *, tile_n):
    """Computes one (tm, tn) tile of hy.

    x_ref  : (tm, In)       batch tile of x, matmul dtype (bf16)
    hk_ref : (tm, Hp)       batch tile of hx (full K dim), matmul dtype
    ht_ref : (tm, tn)       hx columns belonging to this output tile (io dtype)
    wx_ref : (In, 3*tn)     fused [r|u|n] x2h weight columns for this tile
    wh_ref : (Hp, 3*tn)     fused [r|u|n] h2h weight columns for this tile
    b_ref  : (4, tn)        rows: [bx_r+bh_r, bx_u+bh_u, bx_n, bh_n] (f32)
    out_ref: (tm, tn)       hy tile
    """
    tn = tile_n
    # Two fused MXU matmuls (instead of six): native-dtype operands, f32 acc.
    xg = jnp.dot(x_ref[...], wx_ref[...], preferred_element_type=jnp.float32)
    hg = jnp.dot(hk_ref[...], wh_ref[...], preferred_element_type=jnp.float32)

    # Static, lane-aligned slices of the fused results.
    x_r, x_u, x_n = xg[:, :tn], xg[:, tn:2 * tn], xg[:, 2 * tn:]
    h_r, h_u, h_n = hg[:, :tn], hg[:, tn:2 * tn], hg[:, 2 * tn:]

    b_r = b_ref[0:1, :]
    b_u = b_ref[1:2, :]
    bx_n = b_ref[2:3, :]
    bh_n = b_ref[3:4, :]

    # Gate math in f32 (sigmoid/tanh go to the EUP; free next to the MXU path).
    reset_gate = jax.nn.sigmoid(x_r + h_r + b_r)
    update_gate = jax.nn.sigmoid(x_u + h_u + b_u)
    new_gate = jnp.tanh(x_n + bx_n + reset_gate * (h_n + bh_n))

    h_tile = ht_ref[...].astype(jnp.float32)
    hy = update_gate * h_tile + (1.0 - update_gate) * new_gate
    out_ref[...] = hy.astype(out_ref.dtype)


def gru_cell(x, hx, wxg, whg, b4, *, hidden_size, tiling,
             matmul_dtype=jnp.bfloat16):
    """GRUCell forward from prepared params. x: [B, In], hx: [B, H] -> [B, H]."""
    batch, in_size = x.shape
    h = hidden_size
    tm, tn, bp, hp = tiling["tm"], tiling["tn"], tiling["Bp"], tiling["Hp"]
    assert wxg.shape == (in_size, 3 * hp) and whg.shape == (hp, 3 * hp)
    assert hx.shape == (batch, h)

    pad_b = bp - batch
    pad_h = hp - h
    x_p = jnp.pad(x, ((0, pad_b), (0, 0)))
    h_p = jnp.pad(hx, ((0, pad_b), (0, pad_h)))
    x_mm = x_p.astype(matmul_dtype)
    h_mm = h_p.astype(matmul_dtype)

    # Hidden tiles OUTER, batch tiles INNER: weight block index is constant
    # across the inner loop, so Pallas DMAs each weight slab exactly once.
    grid = (hp // tn, bp // tm)
    in_specs = [
        pl.BlockSpec((tm, in_size), lambda j, i: (i, 0)),     # x (matmul)
        pl.BlockSpec((tm, hp), lambda j, i: (i, 0)),          # hx (matmul, full K)
        pl.BlockSpec((tm, tn), lambda j, i: (i, j)),          # hx output-tile cols
        pl.BlockSpec((in_size, 3 * tn), lambda j, i: (0, j)),  # fused x2h weights
        pl.BlockSpec((hp, 3 * tn), lambda j, i: (0, j)),       # fused h2h weights
        pl.BlockSpec((4, tn), lambda j, i: (0, j)),            # folded biases
    ]
    out_spec = pl.BlockSpec((tm, tn), lambda j, i: (i, j))

    kernel = functools.partial(_gru_cell_kernel, tile_n=tn)
    out = pl.pallas_call(
        kernel,
        out_shape=jax.ShapeDtypeStruct((bp, hp), x.dtype),
        grid=grid,
        in_specs=in_specs,
        out_specs=out_spec,
        compiler_params=pltpu.CompilerParams(
            dimension_semantics=("parallel", "parallel"),
            vmem_limit_bytes=tiling["vmem_limit"],
        ),
    )(x_mm, h_mm, h_p, wxg, whg, b4)

    return out[:batch, :h]


def make_params(key, input_size, hidden_size, dtype=jnp.float32):
    """Deterministic init matching reset_parameters(): U(-1/sqrt(H), 1/sqrt(H))."""
    std = 1.0 / math.sqrt(float(hidden_size))
    k1, k2, k3, k4 = jax.random.split(key, 4)
    # nn.Linear weights are [out, in]; store transposed so the kernel does x @ W.
    wx = jax.random.uniform(k1, (input_size, 3 * hidden_size), dtype, -std, std)
    wh = jax.random.uniform(k2, (hidden_size, 3 * hidden_size), dtype, -std, std)
    bx = jax.random.uniform(k3, (1, 3 * hidden_size), dtype, -std, std)
    bh = jax.random.uniform(k4, (1, 3 * hidden_size), dtype, -std, std)
    return wx, wh, bx, bh


def gru_cell_ref(x, hx, wx, wh, bx, bh):
    """Pure-JAX f32 reference mirroring the PyTorch forward."""
    h = hx.shape[1]
    x_t = x @ wx + bx
    h_t = hx @ wh + bh
    x_r, x_u, x_n = x_t[:, :h], x_t[:, h:2 * h], x_t[:, 2 * h:]
    h_r, h_u, h_n = h_t[:, :h], h_t[:, h:2 * h], h_t[:, 2 * h:]
    r = jax.nn.sigmoid(x_r + h_r)
    u = jax.nn.sigmoid(x_u + h_u)
    n = jnp.tanh(x_n + r * h_n)
    return u * hx + (1 - u) * n


if __name__ == "__main__":
    input_size = 16
    hidden_size = 32
    batch = 8

    key = jax.random.PRNGKey(0)
    k_params, k_x, k_h = jax.random.split(key, 3)

    wx, wh, bx, bh = make_params(k_params, input_size, hidden_size)
    x = jax.random.normal(k_x, (batch, input_size), jnp.float32)
    hx = jax.random.normal(k_h, (batch, hidden_size), jnp.float32)

    # One-time param prep (hoisted out of the hot loop), then the kernel call.
    tiling = choose_tiling(batch, input_size, hidden_size)
    wxg, whg, b4 = prepare_gru_params(wx, wh, bx, bh, tn=tiling["tn"])

    hy = gru_cell(x, hx, wxg, whg, b4, hidden_size=hidden_size, tiling=tiling)
    hy = jax.block_until_ready(hy)

    hy_ref = gru_cell_ref(x, hx, wx, wh, bx, bh)
    assert hy.shape == (batch, hidden_size)
    # bf16 matmul operands (f32 accumulation) vs f32 reference -> relaxed tol.
    assert jnp.allclose(hy, hy_ref, atol=5e-2, rtol=5e-2), "mismatch vs reference"

    print("KERNEL_OK")
</pallas_src>

<mosaic_0001>
module attributes {stable_mosaic.version = 11 : i64} {
  func.func @_gru_cell_kernel(%arg0: i32, %arg1: i32, %arg2: memref<8x16xbf16, #tpu.memory_space<vmem>>, %arg3: memref<8x128xbf16, #tpu.memory_space<vmem>>, %arg4: memref<8x128xf32, #tpu.memory_space<vmem>>, %arg5: memref<16x384xbf16, #tpu.memory_space<vmem>>, %arg6: memref<128x384xbf16, #tpu.memory_space<vmem>>, %arg7: memref<4x128xf32, #tpu.memory_space<vmem>>, %arg8: memref<8x128xf32, #tpu.memory_space<vmem>>) attributes {dimension_semantics = [#tpu.dimension_semantics<parallel>, #tpu.dimension_semantics<parallel>], iteration_bounds = array<i64: 1, 1>, scalar_prefetch = 0 : i64, scratch_operands = 0 : i64, tpu.core_type = #tpu.core_type<tc>, window_params = [{transform_indices = @transform_0, window_bounds = array<i64: 8, 16>}, {transform_indices = @transform_1, window_bounds = array<i64: 8, 128>}, {transform_indices = @transform_2, window_bounds = array<i64: 8, 128>}, {transform_indices = @transform_3, window_bounds = array<i64: 16, 384>}, {transform_indices = @transform_4, window_bounds = array<i64: 128, 384>}, {transform_indices = @transform_5, window_bounds = array<i64: 4, 128>}, {transform_indices = @transform_6, window_bounds = array<i64: 8, 128>}]} {
    %c0 = arith.constant 0 : index
    %c0_0 = arith.constant 0 : index
    %0 = vector.load %arg2[%c0, %c0_0] : memref<8x16xbf16, #tpu.memory_space<vmem>>, vector<8x16xbf16>
    %c0_1 = arith.constant 0 : index
    %c0_2 = arith.constant 0 : index
    %1 = vector.load %arg5[%c0_1, %c0_2] : memref<16x384xbf16, #tpu.memory_space<vmem>>, vector<16x384xbf16>
    %cst = arith.constant dense<0.000000e+00> : vector<8x384xf32>
    %2 = tpu.matmul %0, %1, %cst {dimension_numbers = #tpu.dot_dimension_numbers<[1], [0], [0], [1], [0, 0, 1, 1], [], []>} : vector<8x16xbf16>, vector<16x384xbf16>, vector<8x384xf32> -> vector<8x384xf32>
    %c0_3 = arith.constant 0 : index
    %c0_4 = arith.constant 0 : index
    %3 = vector.load %arg3[%c0_3, %c0_4] : memref<8x128xbf16, #tpu.memory_space<vmem>>, vector<8x128xbf16>
    %c0_5 = arith.constant 0 : index
    %c0_6 = arith.constant 0 : index
    %4 = vector.load %arg6[%c0_5, %c0_6] : memref<128x384xbf16, #tpu.memory_space<vmem>>, vector<128x384xbf16>
    %cst_7 = arith.constant dense<0.000000e+00> : vector<8x384xf32>
    %5 = tpu.matmul %3, %4, %cst_7 {dimension_numbers = #tpu.dot_dimension_numbers<[1], [0], [0], [1], [0, 0, 1, 1], [], []>} : vector<8x128xbf16>, vector<128x384xbf16>, vector<8x384xf32> -> vector<8x384xf32>
    %6 = vector.extract_strided_slice %2 {offsets = [0, 0], sizes = [8, 128], strides = [1, 1]} : vector<8x384xf32> to vector<8x128xf32>
    %7 = vector.extract_strided_slice %2 {offsets = [0, 128], sizes = [8, 128], strides = [1, 1]} : vector<8x384xf32> to vector<8x128xf32>
    %8 = vector.extract_strided_slice %2 {offsets = [0, 256], sizes = [8, 128], strides = [1, 1]} : vector<8x384xf32> to vector<8x128xf32>
    %9 = vector.extract_strided_slice %5 {offsets = [0, 0], sizes = [8, 128], strides = [1, 1]} : vector<8x384xf32> to vector<8x128xf32>
    %10 = vector.extract_strided_slice %5 {offsets = [0, 128], sizes = [8, 128], strides = [1, 1]} : vector<8x384xf32> to vector<8x128xf32>
    %11 = vector.extract_strided_slice %5 {offsets = [0, 256], sizes = [8, 128], strides = [1, 1]} : vector<8x384xf32> to vector<8x128xf32>
    %c0_8 = arith.constant 0 : index
    %c0_9 = arith.constant 0 : index
    %12 = vector.load %arg7[%c0_8, %c0_9] : memref<4x128xf32, #tpu.memory_space<vmem>>, vector<1x128xf32>
    %c1 = arith.constant 1 : index
    %c0_10 = arith.constant 0 : index
    %13 = vector.load %arg7[%c1, %c0_10] : memref<4x128xf32, #tpu.memory_space<vmem>>, vector<1x128xf32>
    %c2 = arith.constant 2 : index
    %c0_11 = arith.constant 0 : index
    %14 = vector.load %arg7[%c2, %c0_11] : memref<4x128xf32, #tpu.memory_space<vmem>>, vector<1x128xf32>
    %c3 = arith.constant 3 : index
    %c0_12 = arith.constant 0 : index
    %15 = vector.load %arg7[%c3, %c0_12] : memref<4x128xf32, #tpu.memory_space<vmem>>, vector<1x128xf32>
    %16 = arith.addf %6, %9 : vector<8x128xf32>
    %17 = vector.broadcast %12 : vector<1x128xf32> to vector<8x128xf32>
    %18 = arith.addf %16, %17 : vector<8x128xf32>
    %19 = arith.negf %18 : vector<8x128xf32>
    %20 = math.exp %19 : vector<8x128xf32>
    %cst_13 = arith.constant 1.000000e+00 : f32
    %21 = vector.broadcast %cst_13 : f32 to vector<8x128xf32>
    %22 = arith.addf %21, %20 : vector<8x128xf32>
    %23 = arith.divf %21, %22 : vector<8x128xf32>
    %24 = arith.addf %7, %10 : vector<8x128xf32>
    %25 = vector.broadcast %13 : vector<1x128xf32> to vector<8x128xf32>
    %26 = arith.addf %24, %25 : vector<8x128xf32>
    %27 = arith.negf %26 : vector<8x128xf32>
    %28 = math.exp %27 : vector<8x128xf32>
    %cst_14 = arith.constant 1.000000e+00 : f32
    %29 = vector.broadcast %cst_14 : f32 to vector<8x128xf32>
    %30 = arith.addf %29, %28 : vector<8x128xf32>
    %31 = arith.divf %29, %30 : vector<8x128xf32>
    %32 = vector.broadcast %14 : vector<1x128xf32> to vector<8x128xf32>
    %33 = arith.addf %8, %32 : vector<8x128xf32>
    %34 = vector.broadcast %15 : vector<1x128xf32> to vector<8x128xf32>
    %35 = arith.addf %11, %34 : vector<8x128xf32>
    %36 = arith.mulf %23, %35 : vector<8x128xf32>
    %37 = arith.addf %33, %36 : vector<8x128xf32>
    %38 = math.tanh %37 : vector<8x128xf32>
    %c0_15 = arith.constant 0 : index
    %c0_16 = arith.constant 0 : index
    %39 = vector.load %arg4[%c0_15, %c0_16] : memref<8x128xf32, #tpu.memory_space<vmem>>, vector<8x128xf32>
    %40 = arith.mulf %31, %39 : vector<8x128xf32>
    %cst_17 = arith.constant 1.000000e+00 : f32
    %41 = vector.broadcast %cst_17 : f32 to vector<8x128xf32>
    %42 = arith.subf %41, %31 : vector<8x128xf32>
    %43 = arith.mulf %42, %38 : vector<8x128xf32>
    %44 = arith.addf %40, %43 : vector<8x128xf32>
    %c0_18 = arith.constant 0 : index
    %c0_19 = arith.constant 0 : index
    %45 = vector.load %arg8[%c0_18, %c0_19] : memref<8x128xf32, #tpu.memory_space<vmem>>, vector<8x128xf32>
    tpu.vector_store %arg8[%c0_18, %c0_19], %44 {strides = array<i32>} : memref<8x128xf32, #tpu.memory_space<vmem>>, vector<8x128xf32>,
    return
  }
  func.func @transform_0(%arg0: i32, %arg1: i32) -> (i32, i32) {
    %c0_i32 = arith.constant 0 : i32
    %c0_i32_0 = arith.constant 0 : i32
    return %arg1, %c0_i32 : i32, i32
  }
  func.func @transform_1(%arg0: i32, %arg1: i32) -> (i32, i32) {
    %c0_i32 = arith.constant 0 : i32
    %c0_i32_0 = arith.constant 0 : i32
    return %arg1, %c0_i32 : i32, i32
  }
  func.func @transform_2(%arg0: i32, %arg1: i32) -> (i32, i32) {
    %c0_i32 = arith.constant 0 : i32
    return %arg1, %arg0 : i32, i32
  }
  func.func @transform_3(%arg0: i32, %arg1: i32) -> (i32, i32) {
    %c0_i32 = arith.constant 0 : i32
    %c0_i32_0 = arith.constant 0 : i32
    return %c0_i32, %arg0 : i32, i32
  }
  func.func @transform_4(%arg0: i32, %arg1: i32) -> (i32, i32) {
    %c0_i32 = arith.constant 0 : i32
    %c0_i32_0 = arith.constant 0 : i32
    return %c0_i32, %arg0 : i32, i32
  }
  func.func @transform_5(%arg0: i32, %arg1: i32) -> (i32, i32) {
    %c0_i32 = arith.constant 0 : i32
    %c0_i32_0 = arith.constant 0 : i32
    return %c0_i32, %arg0 : i32, i32
  }
  func.func @transform_6(%arg0: i32, %arg1: i32) -> (i32, i32) {
    %c0_i32 = arith.constant 0 : i32
    return %arg1, %arg0 : i32, i32
  }
}

</mosaic_0001>

<llo_original>
// kernel: tpu_custom_call.1
$region0: #{tpu_custom_call.1}
  #allocation0 [shape = 'u32[]', space=smem, size = 0x4, offset = 0x4, fixed_abs, tag = 'smem constant byte address 0x4 - core index']
  #allocation1 [shape = 'u32[72,128]{1,0:T(1,128)}', space=vmem, size = 0x9000, scoped, tag = 'internal scratch']
  %s0 = inlined_call_operand.hbm [shape: bf16[8,16], index: 0, kind: input, shape index: {}]
  %s1 = inlined_call_operand.hbm [shape: bf16[8,128], index: 1, kind: input, shape index: {}]
  %s2 = inlined_call_operand.hbm [shape: f32[8,128], index: 2, kind: input, shape index: {}]
  %s3 = inlined_call_operand.hbm [shape: bf16[16,384], index: 3, kind: input, shape index: {}]
  %s4 = inlined_call_operand.hbm [shape: bf16[128,384], index: 4, kind: input, shape index: {}]
  %s5 = inlined_call_operand.vmem [shape: f32[4,128], index: 5, kind: input, shape index: {}]
  %s6 = inlined_call_operand.hbm [shape: f32[8,128], index: 6, kind: output, shape index: {}]
  %s7 = sld [smem:[#allocation0]]
  $region54: #{tpu_custom_call.1} parent=0
    _
  %s9 = ssub.s32 1, %s7
  %s10 = scalar_select 0, %s9, %s7
  $region1: #{tpu_custom_call.1} parent=0
    #allocation2 [shape = 'u8[2048]{0}', space=vmem, size = 0x800, scoped, tag = 'input window, operand 0, single buffered']
    #allocation3 [shape = 's32[1]{0}', space=sflag, size = 0x4, scoped, tag = 'scoped memory for tpu_custom_call.1']
    #allocation4 [shape = 's32[1]{0}', space=sflag, size = 0x4, scoped, tag = 'scoped memory for tpu_custom_call.1']
    #allocation5 [shape = 'u8[2048]{0}', space=vmem, size = 0x800, scoped, tag = 'input window, operand 1, single buffered']
    #allocation6 [shape = 's32[1]{0}', space=sflag, size = 0x4, scoped, tag = 'scoped memory for tpu_custom_call.1']
    #allocation7 [shape = 'u8[4096]{0}', space=vmem, size = 0x1000, scoped, tag = 'input window, operand 2, single buffered']
    #allocation8 [shape = 'u8[12288]{0}', space=vmem, size = 0x3000, scoped, tag = 'input window, operand 3, single buffered']
    #allocation9 [shape = 's32[1]{0}', space=sflag, size = 0x4, scoped, tag = 'scoped memory for tpu_custom_call.1']
    #allocation10 [shape = 'u8[98304]{0}', space=vmem, size = 0x18000, scoped, tag = 'input window, operand 4, single buffered']
    #allocation11 [shape = 'u8[4096]{0}', space=vmem, size = 0x1000, scoped, tag = 'output window, operand 0, single buffered']
    %11 = vsyncpa [#allocation3], 0
    %12 = vsyncpa [#allocation6], 0
    %13 = vsyncpa [#allocation9], 0
    %14 = vsyncpa [#allocation4], 0
    // Predicated region
    $region2: #{tpu_custom_call.1} parent=1 // pred_check
      _
    $region3: #{tpu_custom_call.1} parent=1 // pred_check_branch
      %16 = sbr.rel (0) target = $region5
    $region4: #{tpu_custom_call.1} parent=1 // pred_region
      %18 = vsyncadd [#allocation3], 0
      %s20 = sshll.u32 %s0, 4
      %s21 = int_to_ptr.hbm [resolvable:$true] %s20
      %s22 = sshll.u32 [#allocation2], 4
      %s23 = int_to_ptr.vmem [resolvable:$true] %s22
      %25 = dma.hbm_to_vmem [thread:$0]  %s21, 64, %s23, [#allocation3]
    $region5: #{tpu_custom_call.1} parent=1 // pred_fallthru
      _
    // Predicated region
    $region6: #{tpu_custom_call.1} parent=1 // pred_check
      _
    $region7: #{tpu_custom_call.1} parent=1 // pred_check_branch
      %27 = sbr.rel (0) target = $region9
    $region8: #{tpu_custom_call.1} parent=1 // pred_region
      %29 = vsyncadd [#allocation6], 0
      %s31 = sshll.u32 %s1, 4
      %s32 = int_to_ptr.hbm [resolvable:$true] %s31
      %s33 = sshll.u32 [#allocation5], 4
      %s34 = int_to_ptr.vmem [resolvable:$true] %s33
      %36 = dma.hbm_to_vmem [thread:$0]  %s32, 64, %s34, [#allocation6]
    $region9: #{tpu_custom_call.1} parent=1 // pred_fallthru
      _
    // Predicated region
    $region10: #{tpu_custom_call.1} parent=1 // pred_check
      _
    $region11: #{tpu_custom_call.1} parent=1 // pred_check_branch
      %38 = sbr.rel (0) target = $region13
    $region12: #{tpu_custom_call.1} parent=1 // pred_region
      %40 = vsyncadd [#allocation6], 0
      %s42 = sshll.u32 %s2, 4
      %s43 = int_to_ptr.hbm [resolvable:$true] %s42
      %s44 = sshll.u32 [#allocation7], 4
      %s45 = int_to_ptr.vmem [resolvable:$true] %s44
      %47 = dma.hbm_to_vmem [thread:$0]  %s43, 128, %s45, [#allocation6]
    $region13: #{tpu_custom_call.1} parent=1 // pred_fallthru
      _
    // Predicated region
    $region14: #{tpu_custom_call.1} parent=1 // pred_check
      _
    $region15: #{tpu_custom_call.1} parent=1 // pred_check_branch
      %49 = sbr.rel (0) target = $region17
    $region16: #{tpu_custom_call.1} parent=1 // pred_region
      %51 = vsyncadd [#allocation9], 0
      %s52 = sshll.u32 %s3, 4
      %s53 = int_to_ptr.hbm [resolvable:$true] %s52
      %s54 = sshll.u32 [#allocation8], 4
      %s55 = int_to_ptr.vmem [resolvable:$true] %s54
      %60 = dma.hbm_to_vmem [thread:$0]  %s53, 384, %s55, [#allocation9], 192, 192, 12
    $region17: #{tpu_custom_call.1} parent=1 // pred_fallthru
      _
    // Predicated region
    $region18: #{tpu_custom_call.1} parent=1 // pred_check
      _
    $region19: #{tpu_custom_call.1} parent=1 // pred_check_branch
      %62 = sbr.rel (0) target = $region21
    $region20: #{tpu_custom_call.1} parent=1 // pred_region
      %64 = vsyncadd [#allocation9], 0
      %s65 = sshll.u32 %s4, 4
      %s66 = int_to_ptr.hbm [resolvable:$true] %s65
      %s67 = sshll.u32 [#allocation10], 4
      %s68 = int_to_ptr.vmem [resolvable:$true] %s67
      %73 = dma.hbm_to_vmem [thread:$0]  %s66, 3072, %s68, [#allocation9], 192, 192, 12
    $region21: #{tpu_custom_call.1} parent=1 // pred_fallthru
      _
    // Predicated region
    $region22: #{tpu_custom_call.1} parent=1 // pred_check
      _
    $region23: #{tpu_custom_call.1} parent=1 // pred_check_branch
      %75 = sbr.rel (0) target = $region25
    $region24: #{tpu_custom_call.1} parent=1 // pred_region
      _
    $region25: #{tpu_custom_call.1} parent=1 // pred_fallthru
      _
    // Predicated region
    $region26: #{tpu_custom_call.1} parent=1 // pred_check
      _
    $region27: #{tpu_custom_call.1} parent=1 // pred_check_branch
      %77 = sbr.rel (0) target = $region29
    $region28: #{tpu_custom_call.1} parent=1 // pred_region
      %79 = dma.done [#allocation3], 64
    $region29: #{tpu_custom_call.1} parent=1 // pred_fallthru
      _
    // Predicated region
    $region30: #{tpu_custom_call.1} parent=1 // pred_check
      _
    $region31: #{tpu_custom_call.1} parent=1 // pred_check_branch
      %81 = sbr.rel (0) target = $region33
    $region32: #{tpu_custom_call.1} parent=1 // pred_region
      %83 = dma.done [#allocation6], 64
    $region33: #{tpu_custom_call.1} parent=1 // pred_fallthru
      _
    // Predicated region
    $region34: #{tpu_custom_call.1} parent=1 // pred_check
      _
    $region35: #{tpu_custom_call.1} parent=1 // pred_check_branch
      %85 = sbr.rel (0) target = $region37
    $region36: #{tpu_custom_call.1} parent=1 // pred_region
      %87 = dma.done [#allocation6], 128
    $region37: #{tpu_custom_call.1} parent=1 // pred_fallthru
      _
    // Predicated region
    $region38: #{tpu_custom_call.1} parent=1 // pred_check
      _
    $region39: #{tpu_custom_call.1} parent=1 // pred_check_branch
      %89 = sbr.rel (0) target = $region41
    $region40: #{tpu_custom_call.1} parent=1 // pred_region
      %91 = dma.done [#allocation9], 384
    $region41: #{tpu_custom_call.1} parent=1 // pred_fallthru
      _
    // Predicated region
    $region42: #{tpu_custom_call.1} parent=1 // pred_check
      _
    $region43: #{tpu_custom_call.1} parent=1 // pred_check_branch
      %93 = sbr.rel (0) target = $region45
    $region44: #{tpu_custom_call.1} parent=1 // pred_region
      %95 = dma.done [#allocation9], 3072
    $region45: #{tpu_custom_call.1} parent=1 // pred_fallthru
      _
    %v97 = vld [vmem:[#allocation2] sm:$0xf]
    %v98 = vld [vmem:[#allocation8] sm:$0xff]
    %v99 = vld [vmem:[#allocation8 + $0x8] sm:$0xf]
    %v100 = vld [vmem:[#allocation8 + $0xc] sm:$0xff]
    %v101 = vld [vmem:[#allocation8 + $0x14] sm:$0xf]
    %v106 = vunpack.c.l.b16 %v98
    %v107 = vunpack.c.h.b16 %v98
    %v108 = vunpack.c.l.b16 %v99
    %v109 = vunpack.c.l.b16 %v100
    %v110 = vunpack.c.h.b16 %v100
    %v111 = vunpack.c.l.b16 %v101
    %v112 = vpack.c.b16 %v109, %v106
    %v113 = vpack.c.b16 %v110, %v107
    %v114 = vpack.c.b16 %v111, %v108
    %vm118 = vcmask 130048
    %v120 = vsel %vm118, %v97, 0
    %122 = vmatpush.bf16.msra.mxu0 0
    %123 = vmatpush.bf16.msra.mxu0 0
    %124 = vmatpush.bf16.msra.mxu0 0
    %125 = vmatpush.bf16.msra.mxu0 0
    %126 = vmatpush.bf16.msra.mxu0 0
    %127 = vmatpush.bf16.msra.mxu0 0
    %128 = vmatpush.bf16.msra.mxu0 0
    %129 = vmatpush.bf16.msra.mxu0 %v112
    %130 = vmatmul.bf16.gmra.mxu0 %v120
    %v131 = vpop.f32.mrf.mxu0
    %v132 = vadd.f32 0.0, %v131
    %v133 = vpop.f32.mrf.mxu0
    %134 = vdwg.mxu0
    %135 = vmatpush.bf16.msra.mxu0 0
    %136 = vmatpush.bf16.msra.mxu0 0
    %137 = vmatpush.bf16.msra.mxu0 0
    %138 = vmatpush.bf16.msra.mxu0 0
    %139 = vmatpush.bf16.msra.mxu0 0
    %140 = vmatpush.bf16.msra.mxu0 0
    %141 = vmatpush.bf16.msra.mxu0 0
    %142 = vmatpush.bf16.msra.mxu0 %v113
    %143 = vmatmul.bf16.gmra.mxu0 %v120
    %v144 = vpop.f32.mrf.mxu0
    %v145 = vadd.f32 0.0, %v144
    %v146 = vpop.f32.mrf.mxu0
    %147 = vdwg.mxu0
    %148 = vmatpush.bf16.msra.mxu0 0
    %149 = vmatpush.bf16.msra.mxu0 0
    %150 = vmatpush.bf16.msra.mxu0 0
    %151 = vmatpush.bf16.msra.mxu0 0
    %152 = vmatpush.bf16.msra.mxu0 0
    %153 = vmatpush.bf16.msra.mxu0 0
    %154 = vmatpush.bf16.msra.mxu0 0
    %155 = vmatpush.bf16.msra.mxu0 %v114
    %156 = vmatmul.bf16.gmra.mxu0 %v120
    %v157 = vpop.f32.mrf.mxu0
    %v158 = vadd.f32 0.0, %v157
    %v159 = vpop.f32.mrf.mxu0
    %160 = vdwg.mxu0
    %v161 = vld [vmem:[#allocation5] sm:$0xf]
    %v162 = vld [vmem:[#allocation10] sm:$0xff]
    %v163 = vld [vmem:[#allocation10 + $0x8] sm:$0xf]
    %v164 = vld [vmem:[#allocation10 + $0xc] sm:$0xff]
    %v165 = vld [vmem:[#allocation10 + $0x14] sm:$0xf]
    %v166 = vld [vmem:[#allocation10 + $0x18] sm:$0xff]
    %v167 = vld [vmem:[#allocation10 + $0x20] sm:$0xf]
    %v168 = vld [vmem:[#allocation10 + $0x24] sm:$0xff]
    %v169 = vld [vmem:[#allocation10 + $0x2c] sm:$0xf]
    %v170 = vld [vmem:[#allocation10 + $0x30] sm:$0xff]
    %v171 = vld [vmem:[#allocation10 + $0x38] sm:$0xf]
    %v172 = vld [vmem:[#allocation10 + $0x3c] sm:$0xff]
    %v173 = vld [vmem:[#allocation10 + $0x44] sm:$0xf]
    %v174 = vld [vmem:[#allocation10 + $0x48] sm:$0xff]
    %v175 = vld [vmem:[#allocation10 + $0x50] sm:$0xf]
    %v176 = vld [vmem:[#allocation10 + $0x54] sm:$0xff]
    %v177 = vld [vmem:[#allocation10 + $0x5c] sm:$0xf]
    %v178 = vld [vmem:[#allocation10 + $0x60] sm:$0xff]
    %v179 = vld [vmem:[#allocation10 + $0x68] sm:$0xf]
    %v180 = vld [vmem:[#allocation10 + $0x6c] sm:$0xff]
    %v181 = vld [vmem:[#allocation10 + $0x74] sm:$0xf]
    %v182 = vld [vmem:[#allocation10 + $0x78] sm:$0xff]
    %v183 = vld [vmem:[#allocation10 + $0x80] sm:$0xf]
    %v184 = vld [vmem:[#allocation10 + $0x84] sm:$0xff]
    %v185 = vld [vmem:[#allocation10 + $0x8c] sm:$0xf]
    %v186 = vld [vmem:[#allocation10 + $0x90] sm:$0xff]
    %v187 = vld [vmem:[#allocation10 + $0x98] sm:$0xf]
    %v188 = vld [vmem:[#allocation10 + $0x9c] sm:$0xff]
    %v189 = vld [vmem:[#allocation10 + $0xa4] sm:$0xf]
    %v190 = vld [vmem:[#allocation10 + $0xa8] sm:$0xff]
    %v191 = vld [vmem:[#allocation10 + $0xb0] sm:$0xf]
    %v192 = vld [vmem:[#allocation10 + $0xb4] sm:$0xff]
    %v193 = vld [vmem:[#allocation10 + $0xbc] sm:$0xf]
    %v226 = vunpack.c.l.b16 %v162
    %v227 = vunpack.c.h.b16 %v162
    %v228 = vunpack.c.l.b16 %v163
    %v229 = vunpack.c.l.b16 %v164
    %v230 = vunpack.c.h.b16 %v164
    %v231 = vunpack.c.l.b16 %v165
    %v232 = vunpack.c.l.b16 %v166
    %v233 = vunpack.c.h.b16 %v166
    %v234 = vunpack.c.l.b16 %v167
    %v235 = vunpack.c.l.b16 %v168
    %v236 = vunpack.c.h.b16 %v168
    %v237 = vunpack.c.l.b16 %v169
    %v238 = vunpack.c.l.b16 %v170
    %v239 = vunpack.c.h.b16 %v170
    %v240 = vunpack.c.l.b16 %v171
    %v241 = vunpack.c.l.b16 %v172
    %v242 = vunpack.c.h.b16 %v172
    %v243 = vunpack.c.l.b16 %v173
    %v244 = vunpack.c.l.b16 %v174
    %v245 = vunpack.c.h.b16 %v174
    %v246 = vunpack.c.l.b16 %v175
    %v247 = vunpack.c.l.b16 %v176
    %v248 = vunpack.c.h.b16 %v176
    %v249 = vunpack.c.l.b16 %v177
    %v250 = vunpack.c.l.b16 %v178
    %v251 = vunpack.c.h.b16 %v178
    %v252 = vunpack.c.l.b16 %v179
    %v253 = vunpack.c.l.b16 %v180
    %v254 = vunpack.c.h.b16 %v180
    %v255 = vunpack.c.l.b16 %v181
    %v256 = vunpack.c.l.b16 %v182
    %v257 = vunpack.c.h.b16 %v182
    %v258 = vunpack.c.l.b16 %v183
    %v259 = vunpack.c.l.b16 %v184
    %v260 = vunpack.c.h.b16 %v184
    %v261 = vunpack.c.l.b16 %v185
    %v262 = vunpack.c.l.b16 %v186
    %v263 = vunpack.c.h.b16 %v186
    %v264 = vunpack.c.l.b16 %v187
    %v265 = vunpack.c.l.b16 %v188
    %v266 = vunpack.c.h.b16 %v188
    %v267 = vunpack.c.l.b16 %v189
    %v268 = vunpack.c.l.b16 %v190
    %v269 = vunpack.c.h.b16 %v190
    %v270 = vunpack.c.l.b16 %v191
    %v271 = vunpack.c.l.b16 %v192
    %v272 = vunpack.c.h.b16 %v192
    %v273 = vunpack.c.l.b16 %v193
    %v274 = vpack.c.b16 %v229, %v226
    %v275 = vpack.c.b16 %v230, %v227
    %v276 = vpack.c.b16 %v231, %v228
    %v277 = vpack.c.b16 %v235, %v232
    %v278 = vpack.c.b16 %v236, %v233
    %v279 = vpack.c.b16 %v237, %v234
    %v280 = vpack.c.b16 %v241, %v238
    %v281 = vpack.c.b16 %v242, %v239
    %v282 = vpack.c.b16 %v243, %v240
    %v283 = vpack.c.b16 %v247, %v244
    %v284 = vpack.c.b16 %v248, %v245
    %v285 = vpack.c.b16 %v249, %v246
    %v286 = vpack.c.b16 %v253, %v250
    %v287 = vpack.c.b16 %v254, %v251
    %v288 = vpack.c.b16 %v255, %v252
    %v289 = vpack.c.b16 %v259, %v256
    %v290 = vpack.c.b16 %v260, %v257
    %v291 = vpack.c.b16 %v261, %v258
    %v292 = vpack.c.b16 %v265, %v262
    %v293 = vpack.c.b16 %v266, %v263
    %v294 = vpack.c.b16 %v267, %v264
    %v295 = vpack.c.b16 %v271, %v268
    %v296 = vpack.c.b16 %v272, %v269
    %v297 = vpack.c.b16 %v273, %v270
    %322 = vmatpush.bf16.msra.mxu0 %v295
    %323 = vmatpush.bf16.msra.mxu0 %v292
    %324 = vmatpush.bf16.msra.mxu0 %v289
    %325 = vmatpush.bf16.msra.mxu0 %v286
    %326 = vmatpush.bf16.msra.mxu0 %v283
    %327 = vmatpush.bf16.msra.mxu0 %v280
    %328 = vmatpush.bf16.msra.mxu0 %v277
    %329 = vmatpush.bf16.msra.mxu0 %v274
    %330 = vmatmul.bf16.gmra.mxu0 %v161
    %v331 = vpop.f32.mrf.mxu0
    %v332 = vadd.f32 0.0, %v331
    %v333 = vpop.f32.mrf.mxu0
    %334 = vdwg.mxu0
    %335 = vmatpush.bf16.msra.mxu0 %v296
    %336 = vmatpush.bf16.msra.mxu0 %v293
    %337 = vmatpush.bf16.msra.mxu0 %v290
    %338 = vmatpush.bf16.msra.mxu0 %v287
    %339 = vmatpush.bf16.msra.mxu0 %v284
    %340 = vmatpush.bf16.msra.mxu0 %v281
    %341 = vmatpush.bf16.msra.mxu0 %v278
    %342 = vmatpush.bf16.msra.mxu0 %v275
    %343 = vmatmul.bf16.gmra.mxu0 %v161
    %v344 = vpop.f32.mrf.mxu0
    %v345 = vadd.f32 0.0, %v344
    %v346 = vpop.f32.mrf.mxu0
    %347 = vdwg.mxu0
    %348 = vmatpush.bf16.msra.mxu0 %v297
    %349 = vmatpush.bf16.msra.mxu0 %v294
    %350 = vmatpush.bf16.msra.mxu0 %v291
    %351 = vmatpush.bf16.msra.mxu0 %v288
    %352 = vmatpush.bf16.msra.mxu0 %v285
    %353 = vmatpush.bf16.msra.mxu0 %v282
    %354 = vmatpush.bf16.msra.mxu0 %v279
    %355 = vmatpush.bf16.msra.mxu0 %v276
    %356 = vmatmul.bf16.gmra.mxu0 %v161
    %v357 = vpop.f32.mrf.mxu0
    %v358 = vadd.f32 0.0, %v357
    %v359 = vpop.f32.mrf.mxu0
    %360 = vdwg.mxu0
    %v361 = vld [vmem:[%s5] sm:$0x1]
    %v362 = vld [vmem:[%s5 + $0x1] sm:$0x1]
    %v363 = vld [vmem:[%s5 + $0x2] sm:$0x1]
    %v364 = vld [vmem:[%s5 + $0x3] sm:$0x1]
    %v365 = vadd.f32 %v132, %v332
    %v366 = vperm.slane %v361, 0
    %v367 = vadd.f32 %v365, %v366
    %v368 = vxor.u32 %v367, 2147483648
    %v369 = vmul.f32 %v368, 1.442695
    %v370 = vpow.pop %v369
    %v371 = vadd.f32 %v370, 1.0
    %v372 = vrcp.pop %v371
    %v373 = vmul.f32 %v371, %v372
    %v374 = vsub.f32 1.0, %v373
    %v375 = vmul.f32 %v372, %v374
    %v376 = vadd.f32 %v372, %v375
    %vm377 = vweird.f32 %v371
    %vm378 = vweird.f32 %v372
    %vm379 = vmor %vm377, %vm378
    %v380 = vsel %vm379, %v372, %v376
    %v381 = vand.u32 2147483647, %v371
    %vm382 = vcmp.eq.f32.partialorder %v381, 8.507059e+37
    %v383 = vand.u32 %v371, 2147483648
    %v384 = vor.u32 1.1754944e-38, %v383
    %v385 = vsel %vm382, %v384, %v380
    %v386 = vmul.f32 1.0, %v385
    %v387 = vadd.f32 %v145, %v345
    %v388 = vperm.slane %v362, 0
    %v389 = vadd.f32 %v387, %v388
    %v390 = vxor.u32 %v389, 2147483648
    %v391 = vmul.f32 %v390, 1.442695
    %v392 = vpow.pop %v391
    %v393 = vadd.f32 %v392, 1.0
    %v394 = vrcp.pop %v393
    %v395 = vmul.f32 %v393, %v394
    %v396 = vsub.f32 1.0, %v395
    %v397 = vmul.f32 %v394, %v396
    %v398 = vadd.f32 %v394, %v397
    %vm399 = vweird.f32 %v393
    %vm400 = vweird.f32 %v394
    %vm401 = vmor %vm399, %vm400
    %v402 = vsel %vm401, %v394, %v398
    %v403 = vand.u32 2147483647, %v393
    %vm404 = vcmp.eq.f32.partialorder %v403, 8.507059e+37
    %v405 = vand.u32 %v393, 2147483648
    %v406 = vor.u32 1.1754944e-38, %v405
    %v407 = vsel %vm404, %v406, %v402
    %v408 = vmul.f32 1.0, %v407
    %v409 = vperm.slane %v363, 0
    %v410 = vadd.f32 %v158, %v409
    %v411 = vperm.slane %v364, 0
    %v412 = vadd.f32 %v358, %v411
    %v413 = vmul.f32 %v386, %v412
    %v414 = vadd.f32 %v410, %v413
    %v415 = vtanh.pop %v414
    %v416 = vld [vmem:[#allocation7] sm:$0xff]
    %v417 = vmul.f32 %v408, %v416
    %v418 = vsub.f32 1.0, %v408
    %v419 = vmul.f32 %v418, %v415
    %v420 = vadd.f32 %v417, %v419
    %421 = vst [vmem:[#allocation11] sm:$0xff] %v420
    // Predicated region
    $region46: #{tpu_custom_call.1} parent=1 // pred_check
      _
    $region47: #{tpu_custom_call.1} parent=1 // pred_check_branch
      %423 = sbr.rel (0) target = $region49
    $region48: #{tpu_custom_call.1} parent=1 // pred_region
      %425 = vsyncadd [#allocation4], 0
      %s427 = sshll.u32 [#allocation11], 4
      %s428 = int_to_ptr.vmem [resolvable:$true] %s427
      %s429 = sshll.u32 %s6, 4
      %s430 = int_to_ptr.hbm [resolvable:$true] %s429
      %432 = dma.vmem_to_hbm [thread:$0]  %s428, 128, %s430, [#allocation4]
    $region49: #{tpu_custom_call.1} parent=1 // pred_fallthru
      _
    // Predicated region
    $region50: #{tpu_custom_call.1} parent=1 // pred_check
      _
    $region51: #{tpu_custom_call.1} parent=1 // pred_check_branch
      %434 = sbr.rel (0) target = $region53
    $region52: #{tpu_custom_call.1} parent=1 // pred_region
      %436 = dma.done [#allocation4], 128
    $region53: #{tpu_custom_call.1} parent=1 // pred_fallthru
      _
    %437 = vsyncpa [#allocation3], 1
    %438 = vsyncpa [#allocation6], 1
    %439 = vsyncpa [#allocation9], 1
    %440 = vsyncpa [#allocation4], 1

</llo_original>
